<compile_context>
chip_gen: v6e
topology: v6e:2x2x1
jax: 0.10.0
libtpu: 0.0.40
codegen_flags: <defaults>
</compile_context>

<pallas_src>
import jax
import jax.numpy as jnp
from jax.experimental import pallas as pl
from jax.experimental.pallas import tpu as pltpu


_TILE_BYTE_BUDGET = 4 * 1024 * 1024   # per tile; in+out double-buffered -> ~16 MiB resident
_VMEM_LIMIT_BYTES = 32 * 1024 * 1024  # safe on v7x (32 MiB scoped), raises v5e's 16 MiB default


def _copy_kernel(x_ref, o_ref):
    # Full-tile, lane-dense copy. The chomp lives in the grid/BlockSpec: the
    # output array is (rows, L_out), so Pallas clips the (at most one) ragged
    # tail tile automatically; all other tiles are unmasked 128-lane stores.
    o_ref[...] = x_ref[...]


def _round_up(v: int, m: int) -> int:
    return ((v + m - 1) // m) * m


def _pick_tiles(r: int, l_out: int, itemsize: int) -> tuple[int, int]:
    """Byte-budgeted tile sizes; lane axis grown first, then rows."""
    budget = _TILE_BYTE_BUDGET

    # Lane (L) tile: multiple of 128 so both the (longer) input and the output
    # BlockSpecs stay lane-aligned / layout-legal; capped so that even a
    # minimal 8-row slab stays inside the byte budget.
    lanes_needed = _round_up(l_out, 128)
    max_lanes = max(128, (budget // (8 * itemsize)) // 128 * 128)
    tile_l = min(lanes_needed, max_lanes)

    # Row (sublane) tile fills the remaining budget: full extent when it fits
    # (always layout-legal), else a multiple-of-8 slab.
    max_rows = max(8, (budget // (tile_l * itemsize)) // 8 * 8)
    tile_r = r if r <= max_rows else max_rows

    # Guarantee >= 2 grid blocks when the tensor is big enough so a v7x
    # megacore can shard the copy across its 2 TensorCores.
    if pl.cdiv(r, tile_r) * pl.cdiv(l_out, tile_l) == 1:
        if r >= 16:
            tile_r = _round_up(pl.cdiv(r, 2), 8)
        elif l_out >= 256:
            tile_l = _round_up(pl.cdiv(l_out, 2), 128)

    return tile_r, tile_l


def chomp1d(x: jax.Array, chomp_size: int) -> jax.Array:
    """Pallas equivalent of torch Chomp1d: x[:, :, :-chomp_size] for x of shape (N, C, L)."""
    n, c, l = x.shape
    assert 0 < chomp_size < l, "chomp_size must be in (0, L)"
    l_out = l - chomp_size

    # Collapse (N, C) -> rows so small channel counts still fill the 8-sublane
    # granules (sublane-dense DMAs). Contiguous reshape: free outside the kernel.
    r = n * c
    x2 = x.reshape(r, l)

    itemsize = jnp.dtype(x.dtype).itemsize
    tile_r, tile_l = _pick_tiles(r, l_out, itemsize)
    grid = (pl.cdiv(r, tile_r), pl.cdiv(l_out, tile_l))

    out2 = pl.pallas_call(
        _copy_kernel,
        out_shape=jax.ShapeDtypeStruct((r, l_out), x.dtype),
        grid=grid,
        # Same block index for input and output: the chomp keeps the prefix,
        # so output block (i, j) reads exactly input block (i, j).
        in_specs=[pl.BlockSpec((tile_r, tile_l), lambda i, j: (i, j))],
        out_specs=pl.BlockSpec((tile_r, tile_l), lambda i, j: (i, j)),
        compiler_params=pltpu.CompilerParams(
            dimension_semantics=("parallel", "parallel"),
            vmem_limit_bytes=_VMEM_LIMIT_BYTES,
        ),
    )(x2)

    return out2.reshape(n, c, l_out)


if __name__ == "__main__":
    key = jax.random.PRNGKey(0)

    # Small TCN-like shape: (batch, channels, length); chomp = (k-1)*dilation.
    N, C, L = 2, 4, 16
    chomp_size = 3
    x = jax.random.normal(key, (N, C, L), dtype=jnp.float32)

    out = jax.block_until_ready(chomp1d(x, chomp_size))
    ref = x[:, :, :-chomp_size]
    assert out.shape == (N, C, L - chomp_size), out.shape
    assert jnp.array_equal(out, ref), "mismatch vs reference slice"

    # Second check: multi-row grid (>=2 parallel blocks), ragged lane tail,
    # bf16 packing, byte-budgeted tile sizing.
    x2 = jax.random.normal(jax.random.PRNGKey(0), (2, 8, 1200), dtype=jnp.bfloat16)
    out2 = jax.block_until_ready(chomp1d(x2, 47))
    ref2 = x2[:, :, :-47]
    assert out2.shape == ref2.shape, out2.shape
    assert jnp.array_equal(out2, ref2), "mismatch vs reference slice (case 2)"

    print("KERNEL_OK")
</pallas_src>

<mosaic_0001>
module attributes {stable_mosaic.version = 11 : i64} {
  func.func @_copy_kernel(%arg0: i32, %arg1: i32, %arg2: memref<8x128xf32, #tpu.memory_space<vmem>>, %arg3: memref<8x128xf32, #tpu.memory_space<vmem>>) attributes {dimension_semantics = [#tpu.dimension_semantics<parallel>, #tpu.dimension_semantics<parallel>], iteration_bounds = array<i64: 1, 1>, scalar_prefetch = 0 : i64, scratch_operands = 0 : i64, tpu.core_type = #tpu.core_type<tc>, window_params = [{transform_indices = @transform_0, window_bounds = array<i64: 8, 128>}, {transform_indices = @transform_1, window_bounds = array<i64: 8, 128>}]} {
    %c0 = arith.constant 0 : index
    %c0_0 = arith.constant 0 : index
    %0 = vector.load %arg2[%c0, %c0_0] : memref<8x128xf32, #tpu.memory_space<vmem>>, vector<8x128xf32>
    %c0_1 = arith.constant 0 : index
    %c0_2 = arith.constant 0 : index
    %1 = vector.load %arg3[%c0_1, %c0_2] : memref<8x128xf32, #tpu.memory_space<vmem>>, vector<8x128xf32>
    tpu.vector_store %arg3[%c0_1, %c0_2], %0 {strides = array<i32>} : memref<8x128xf32, #tpu.memory_space<vmem>>, vector<8x128xf32>,
    return
  }
  func.func @transform_0(%arg0: i32, %arg1: i32) -> (i32, i32) {
    %c0_i32 = arith.constant 0 : i32
    return %arg0, %arg1 : i32, i32
  }
  func.func @transform_1(%arg0: i32, %arg1: i32) -> (i32, i32) {
    %c0_i32 = arith.constant 0 : i32
    return %arg0, %arg1 : i32, i32
  }
}

</mosaic_0001>

<llo_original>
// kernel: tpu_custom_call.1
$region0: #{tpu_custom_call.1}
  #allocation0 [shape = 'u32[]', space=smem, size = 0x4, offset = 0x4, fixed_abs, tag = 'smem constant byte address 0x4 - core index']
  #allocation1 [shape = 'u32[144,128]{1,0:T(1,128)}', space=vmem, size = 0x12000, scoped, tag = 'internal scratch']
  %s0 = inlined_call_operand.hbm [shape: f32[8,16], index: 0, kind: input, shape index: {}]
  %s1 = inlined_call_operand.hbm [shape: f32[8,13], index: 1, kind: output, shape index: {}]
  %s2 = sld [smem:[#allocation0]]
  $region18: #{tpu_custom_call.1} parent=0
    _
  %s4 = ssub.s32 1, %s2
  %s5 = scalar_select 0, %s4, %s2
  $region1: #{tpu_custom_call.1} parent=0
    #allocation2 [shape = 'u8[4096]{0}', space=vmem, size = 0x1000, scoped, tag = 'input window, operand 0, single buffered']
    #allocation3 [shape = 's32[1]{0}', space=sflag, size = 0x4, scoped, tag = 'scoped memory for tpu_custom_call.1']
    #allocation4 [shape = 's32[1]{0}', space=sflag, size = 0x4, scoped, tag = 'scoped memory for tpu_custom_call.1']
    #allocation5 [shape = 'u8[4096]{0}', space=vmem, size = 0x1000, scoped, tag = 'output window, operand 0, single buffered']
    %6 = vsyncpa [#allocation3], 0
    %7 = vsyncpa [#allocation4], 0
    // Predicated region
    $region2: #{tpu_custom_call.1} parent=1 // pred_check
      _
    $region3: #{tpu_custom_call.1} parent=1 // pred_check_branch
      %9 = sbr.rel (0) target = $region5
    $region4: #{tpu_custom_call.1} parent=1 // pred_region
      %s11 = ssub.s32 128, 128
      %12 = vsyncadd [#allocation3], %s11
      %s14 = sshll.u32 [#allocation2], 4
      %s15 = int_to_ptr.vmem [resolvable:$true] %s14
      %17 = dma.hbm_to_vmem [thread:$0]  %s0, 128, %s15, [#allocation3]
    $region5: #{tpu_custom_call.1} parent=1 // pred_fallthru
      _
    // Predicated region
    $region6: #{tpu_custom_call.1} parent=1 // pred_check
      _
    $region7: #{tpu_custom_call.1} parent=1 // pred_check_branch
      %19 = sbr.rel (0) target = $region9
    $region8: #{tpu_custom_call.1} parent=1 // pred_region
      %20 = dma.done [#allocation3], 128
    $region9: #{tpu_custom_call.1} parent=1 // pred_fallthru
      _
    %v21 = vld [vmem:[#allocation2] sm:$0xff]
    %22 = vst [vmem:[#allocation5] sm:$0xff] %v21
    // Predicated region
    $region10: #{tpu_custom_call.1} parent=1 // pred_check
      _
    $region11: #{tpu_custom_call.1} parent=1 // pred_check_branch
      %24 = sbr.rel (0) target = $region13
    $region12: #{tpu_custom_call.1} parent=1 // pred_region
      %s26 = ssub.s32 128, 128
      %27 = vsyncadd [#allocation4], %s26
      %s29 = sshll.u32 [#allocation5], 4
      %s30 = int_to_ptr.vmem [resolvable:$true] %s29
      %32 = dma.vmem_to_hbm [thread:$0]  %s30, 128, %s1, [#allocation4]
    $region13: #{tpu_custom_call.1} parent=1 // pred_fallthru
      _
    // Predicated region
    $region14: #{tpu_custom_call.1} parent=1 // pred_check
      _
    $region15: #{tpu_custom_call.1} parent=1 // pred_check_branch
      %34 = sbr.rel (0) target = $region17
    $region16: #{tpu_custom_call.1} parent=1 // pred_region
      %35 = dma.done [#allocation4], 128
    $region17: #{tpu_custom_call.1} parent=1 // pred_fallthru
      _
    %36 = vsyncpa [#allocation3], 1
    %37 = vsyncpa [#allocation4], 1

</llo_original>
